<compile_context>
chip_gen: v6e
topology: v6e:2x2x1
jax: 0.10.0
libtpu: 0.0.40
codegen_flags: <defaults>
</compile_context>

<pallas_src>
import math

import jax
import jax.numpy as jnp
from jax.experimental import pallas as pl
from jax.experimental.pallas import tpu as pltpu

_LANE = 128  # pad hidden dim to a full lane width


def _statistic_kernel(b2_ref,              # scalar prefetch (SMEM), shape (1,)
                      feat_ref, rep_ref,   # (TB, Ff), (TB, R)  -- native float dtype
                      w1a_ref, w1b_ref,    # (Ff, Hp), (R, Hp)  -- f32, resident
                      b1_ref, w2_ref,      # (1, Hp),  (1, Hp)  -- f32, resident
                      o_ref):              # (TB, 1)            -- f32
    # Up-cast activation tiles to f32 (no-op for f32 inputs, cheap VPU cast for bf16).
    feat = feat_ref[...].astype(jnp.float32)
    rep = rep_ref[...].astype(jnp.float32)

    # Layer 1 -- fused "concat" matmul: x @ W1 == feat @ W1a + rep @ W1b (MXU).
    # HIGHEST precision for fp32 parity; free since the kernel is HBM-bound.
    h = jnp.dot(feat, w1a_ref[...],
                preferred_element_type=jnp.float32,
                precision=jax.lax.Precision.HIGHEST)
    h = h + jnp.dot(rep, w1b_ref[...],
                    preferred_element_type=jnp.float32,
                    precision=jax.lax.Precision.HIGHEST)
    h = jax.nn.sigmoid(h + b1_ref[...])                      # (TB, Hp), f32 (EUP)

    # Layer 2 (N=1) -- VPU multiply + cross-lane (XLU) reduction, not the MXU.
    # Padded hidden columns have w2 == 0, so they contribute exactly nothing.
    out = jnp.sum(h * w2_ref[...], axis=-1, keepdims=True) + b2_ref[0]  # (TB, 1)
    o_ref[...] = out.astype(o_ref.dtype)


def prepare_statistic_params(params, num_feature_features):
    """One-time weight prep: split/zero-pad W1, pad b1/W2, extract scalar b2."""
    w1, b1, w2, b2 = params["w1"], params["b1"], params["w2"], params["b2"]
    f_in, hidden = w1.shape
    ff = num_feature_features
    r = f_in - ff
    hp = ((hidden + _LANE - 1) // _LANE) * _LANE             # 64 -> 128

    w1p = jnp.pad(jnp.asarray(w1, jnp.float32), ((0, 0), (0, hp - hidden)))
    b1p = jnp.pad(jnp.asarray(b1, jnp.float32).reshape(1, hidden),
                  ((0, 0), (0, hp - hidden)))
    w2_row = jnp.pad(jnp.asarray(w2, jnp.float32).reshape(1, hidden),
                     ((0, 0), (0, hp - hidden)))
    # NOTE: assumes the head is a single output unit (b2 is a scalar).
    b2_s = jnp.asarray(b2, jnp.float32).reshape(-1)[:1]

    return {
        "w1a": w1p[:ff],                                     # (Ff, Hp)
        "w1b": w1p[ff:ff + r],                               # (R, Hp)
        "b1": b1p,                                           # (1, Hp)
        "w2_row": w2_row,                                    # (1, Hp)
        "b2": b2_s,                                          # (1,) -> SMEM prefetch
    }


def statistic_forward(feature, representation, prepared, *, tb=4096):
    """feature: (B, C, d, d) NCHW, representation: (B, rep_dim) -> (B, 1) f32.

    `tb` is the batch tile (sweep 2048-8192; larger on v7x but keep >= 2 tiles
    for megacore sharding).  `prepared` comes from prepare_statistic_params.
    """
    assert tb % 8 == 0, "batch tile must be a multiple of 8 (sublane tiling)"

    B = feature.shape[0]
    feat = feature.reshape(B, -1)                            # row-major flatten (NCHW)
    rep = representation
    # Keep bf16/f32 inputs as-is (halves HBM read for bf16); anything else -> f32.
    if feat.dtype not in (jnp.float32, jnp.bfloat16):
        feat = feat.astype(jnp.float32)
    if rep.dtype not in (jnp.float32, jnp.bfloat16):
        rep = rep.astype(jnp.float32)

    Ff, R = feat.shape[1], rep.shape[1]
    w1a, w1b = prepared["w1a"], prepared["w1b"]
    b1p, w2_row, b2_s = prepared["b1"], prepared["w2_row"], prepared["b2"]
    assert w1a.shape[0] == Ff and w1b.shape[0] == R
    Hp = w1a.shape[1]

    # No wrapper-side batch padding: ragged last tile is handled by Pallas
    # (edge DMAs are clamped; out-of-range output rows are never written).
    tb_eff = B if B <= tb else tb
    num_tiles = pl.cdiv(B, tb_eff)

    isz_f = jnp.dtype(feat.dtype).itemsize
    isz_r = jnp.dtype(rep.dtype).itemsize

    # Raise the scoped-VMEM limit only when the swept tile needs it
    # (v5e default is 16 MiB).  Cap at 64 MiB = v7x physical VMEM per TC.
    bytes_feat = tb_eff * Ff * isz_f
    bytes_rep = tb_eff * R * isz_r
    bytes_out = tb_eff * _LANE * 4            # (tb,1) block pads to 128 lanes in VMEM
    bytes_w = (Ff + R + 2) * Hp * 4
    vmem_est = 2 * (bytes_feat + bytes_rep + bytes_out + bytes_w)  # double-buffered
    vmem_limit = None
    if vmem_est > 12 * 1024 * 1024:
        vmem_limit = min(2 * vmem_est, 64 * 1024 * 1024)

    out = pl.pallas_call(
        _statistic_kernel,
        out_shape=jax.ShapeDtypeStruct((B, 1), jnp.float32),
        grid_spec=pltpu.PrefetchScalarGridSpec(
            num_scalar_prefetch=1,
            grid=(num_tiles,),
            in_specs=[
                pl.BlockSpec((tb_eff, Ff), lambda i, b2r: (i, 0)),   # feature tile
                pl.BlockSpec((tb_eff, R), lambda i, b2r: (i, 0)),    # representation tile
                pl.BlockSpec((Ff, Hp), lambda i, b2r: (0, 0)),       # W1a (resident)
                pl.BlockSpec((R, Hp), lambda i, b2r: (0, 0)),        # W1b (resident)
                pl.BlockSpec((1, Hp), lambda i, b2r: (0, 0)),        # b1
                pl.BlockSpec((1, Hp), lambda i, b2r: (0, 0)),        # w2 row
            ],
            out_specs=pl.BlockSpec((tb_eff, 1), lambda i, b2r: (i, 0)),
        ),
        compiler_params=pltpu.CompilerParams(
            dimension_semantics=("parallel",),
            vmem_limit_bytes=vmem_limit,
        ),
        cost_estimate=pl.CostEstimate(
            flops=2 * B * (Ff + R) * Hp + 4 * B * Hp,
            transcendentals=B * Hp,
            bytes_accessed=(B * Ff * isz_f + B * R * isz_r
                            + (Ff + R + 2) * Hp * 4 + B * 4),
        ),
    )(b2_s, feat, rep, w1a, w1b, b1p, w2_row)

    return out


def init_params(key, in_features, hidden=64):
    """Deterministic init mimicking torch.nn.Linear (uniform +/- 1/sqrt(fan_in))."""
    k1, k2, k3, k4 = jax.random.split(key, 4)
    bound1 = 1.0 / math.sqrt(in_features)
    bound2 = 1.0 / math.sqrt(hidden)
    return {
        "w1": jax.random.uniform(k1, (in_features, hidden), jnp.float32,
                                 -bound1, bound1),
        "b1": jax.random.uniform(k2, (1, hidden), jnp.float32, -bound1, bound1),
        "w2": jax.random.uniform(k3, (hidden, 1), jnp.float32, -bound2, bound2),
        "b2": jax.random.uniform(k4, (1, 1), jnp.float32, -bound2, bound2),
    }


if __name__ == "__main__":
    # statistic(midchannel=4, rep_dim=32, d=4): in_features = 4*4*4 + 32 = 96
    B, C, d, rep_dim = 2, 4, 4, 32
    in_features = C * d * d + rep_dim

    key = jax.random.PRNGKey(0)
    kf, kr, kp = jax.random.split(key, 3)
    feature = jax.random.normal(kf, (B, C, d, d), jnp.float32)
    representation = jax.random.normal(kr, (B, rep_dim), jnp.float32)
    params = init_params(kp, in_features)

    prepared = prepare_statistic_params(params, C * d * d)   # one-time weight prep
    out = statistic_forward(feature, representation, prepared)
    jax.block_until_ready(out)

    # Pure-JAX reference (matches the PyTorch forward exactly; full-f32 matmuls).
    x_ref = jnp.concatenate([feature.reshape(B, -1), representation], axis=1)
    h_ref = jax.nn.sigmoid(
        jnp.dot(x_ref, params["w1"], precision=jax.lax.Precision.HIGHEST)
        + params["b1"])
    ref = jnp.dot(h_ref, params["w2"],
                  precision=jax.lax.Precision.HIGHEST) + params["b2"]

    assert out.shape == (B, 1)
    assert jnp.allclose(out, ref, atol=1e-4, rtol=1e-4), (
        f"max abs err {jnp.max(jnp.abs(out - ref))}")

    print("KERNEL_OK")
</pallas_src>

<mosaic_0001>
module attributes {stable_mosaic.version = 11 : i64} {
  func.func @_statistic_kernel(%arg0: i32, %arg1: memref<1xf32, #tpu.memory_space<smem>>, %arg2: memref<2x64xf32, #tpu.memory_space<vmem>>, %arg3: memref<2x32xf32, #tpu.memory_space<vmem>>, %arg4: memref<64x128xf32, #tpu.memory_space<vmem>>, %arg5: memref<32x128xf32, #tpu.memory_space<vmem>>, %arg6: memref<1x128xf32, #tpu.memory_space<vmem>>, %arg7: memref<1x128xf32, #tpu.memory_space<vmem>>, %arg8: memref<2x1xf32, #tpu.memory_space<vmem>>) attributes {dimension_semantics = [#tpu.dimension_semantics<parallel>], iteration_bounds = array<i64: 1>, scalar_prefetch = 1 : i64, scratch_operands = 0 : i64, tpu.core_type = #tpu.core_type<tc>, window_params = [{transform_indices = @transform_0, window_bounds = array<i64: 2, 64>}, {transform_indices = @transform_1, window_bounds = array<i64: 2, 32>}, {pipeline_mode = #tpu.pipeline_mode<synchronous>, transform_indices = @transform_2, window_bounds = array<i64: 64, 128>}, {pipeline_mode = #tpu.pipeline_mode<synchronous>, transform_indices = @transform_3, window_bounds = array<i64: 32, 128>}, {pipeline_mode = #tpu.pipeline_mode<synchronous>, transform_indices = @transform_4, window_bounds = array<i64: 1, 128>}, {pipeline_mode = #tpu.pipeline_mode<synchronous>, transform_indices = @transform_5, window_bounds = array<i64: 1, 128>}, {transform_indices = @transform_6, window_bounds = array<i64: 2, 1>}]} {
    %c0 = arith.constant 0 : index
    %c0_0 = arith.constant 0 : index
    %0 = vector.load %arg2[%c0, %c0_0] : memref<2x64xf32, #tpu.memory_space<vmem>>, vector<2x64xf32>
    %c0_1 = arith.constant 0 : index
    %c0_2 = arith.constant 0 : index
    %1 = vector.load %arg3[%c0_1, %c0_2] : memref<2x32xf32, #tpu.memory_space<vmem>>, vector<2x32xf32>
    %c0_3 = arith.constant 0 : index
    %c0_4 = arith.constant 0 : index
    %2 = vector.load %arg4[%c0_3, %c0_4] : memref<64x128xf32, #tpu.memory_space<vmem>>, vector<64x128xf32>
    %cst = arith.constant dense<0.000000e+00> : vector<2x128xf32>
    %3 = tpu.matmul %0, %2, %cst {dimension_numbers = #tpu.dot_dimension_numbers<[1], [0], [0], [1], [0, 0, 1, 1], [], []>, precision = #tpu.contract_precision<fp32>} : vector<2x64xf32>, vector<64x128xf32>, vector<2x128xf32> -> vector<2x128xf32>
    %c0_5 = arith.constant 0 : index
    %c0_6 = arith.constant 0 : index
    %4 = vector.load %arg5[%c0_5, %c0_6] : memref<32x128xf32, #tpu.memory_space<vmem>>, vector<32x128xf32>
    %cst_7 = arith.constant dense<0.000000e+00> : vector<2x128xf32>
    %5 = tpu.matmul %1, %4, %cst_7 {dimension_numbers = #tpu.dot_dimension_numbers<[1], [0], [0], [1], [0, 0, 1, 1], [], []>, precision = #tpu.contract_precision<fp32>} : vector<2x32xf32>, vector<32x128xf32>, vector<2x128xf32> -> vector<2x128xf32>
    %6 = arith.addf %3, %5 : vector<2x128xf32>
    %c0_8 = arith.constant 0 : index
    %c0_9 = arith.constant 0 : index
    %7 = vector.load %arg6[%c0_8, %c0_9] : memref<1x128xf32, #tpu.memory_space<vmem>>, vector<1x128xf32>
    %8 = vector.broadcast %7 : vector<1x128xf32> to vector<2x128xf32>
    %9 = arith.addf %6, %8 : vector<2x128xf32>
    %10 = arith.negf %9 : vector<2x128xf32>
    %11 = math.exp %10 : vector<2x128xf32>
    %cst_10 = arith.constant 1.000000e+00 : f32
    %12 = vector.broadcast %cst_10 : f32 to vector<2x128xf32>
    %13 = arith.addf %12, %11 : vector<2x128xf32>
    %14 = arith.divf %12, %13 : vector<2x128xf32>
    %c0_11 = arith.constant 0 : index
    %c0_12 = arith.constant 0 : index
    %15 = vector.load %arg7[%c0_11, %c0_12] : memref<1x128xf32, #tpu.memory_space<vmem>>, vector<1x128xf32>
    %16 = vector.broadcast %15 : vector<1x128xf32> to vector<2x128xf32>
    %17 = arith.mulf %14, %16 : vector<2x128xf32>
    %cst_13 = arith.constant dense<0.000000e+00> : vector<2xf32>
    %18 = vector.multi_reduction <add>, %17, %cst_13 [1] : vector<2x128xf32> to vector<2xf32>
    %19 = vector.shape_cast %18 : vector<2xf32> to vector<2x1xf32>
    %c0_14 = arith.constant 0 : index
    %20 = memref.load %arg1[%c0_14] : memref<1xf32, #tpu.memory_space<smem>>
    %21 = vector.broadcast %20 : f32 to vector<2x1xf32>
    %22 = arith.addf %19, %21 : vector<2x1xf32>
    %c0_15 = arith.constant 0 : index
    %c0_16 = arith.constant 0 : index
    %23 = vector.load %arg8[%c0_15, %c0_16] : memref<2x1xf32, #tpu.memory_space<vmem>>, vector<2x1xf32>
    tpu.vector_store %arg8[%c0_15, %c0_16], %22 {strides = array<i32>} : memref<2x1xf32, #tpu.memory_space<vmem>>, vector<2x1xf32>,
    return
  }
  func.func @transform_0(%arg0: i32, %arg1: memref<1xf32, #tpu.memory_space<smem>>) -> (i32, i32) {
    %c0_i32 = arith.constant 0 : i32
    %c0_i32_0 = arith.constant 0 : i32
    return %arg0, %c0_i32 : i32, i32
  }
  func.func @transform_1(%arg0: i32, %arg1: memref<1xf32, #tpu.memory_space<smem>>) -> (i32, i32) {
    %c0_i32 = arith.constant 0 : i32
    %c0_i32_0 = arith.constant 0 : i32
    return %arg0, %c0_i32 : i32, i32
  }
  func.func @transform_2(%arg0: i32, %arg1: memref<1xf32, #tpu.memory_space<smem>>) -> (i32, i32) {
    %c0_i32 = arith.constant 0 : i32
    %c0_i32_0 = arith.constant 0 : i32
    %c0_i32_1 = arith.constant 0 : i32
    return %c0_i32, %c0_i32_0 : i32, i32
  }
  func.func @transform_3(%arg0: i32, %arg1: memref<1xf32, #tpu.memory_space<smem>>) -> (i32, i32) {
    %c0_i32 = arith.constant 0 : i32
    %c0_i32_0 = arith.constant 0 : i32
    %c0_i32_1 = arith.constant 0 : i32
    return %c0_i32, %c0_i32_0 : i32, i32
  }
  func.func @transform_4(%arg0: i32, %arg1: memref<1xf32, #tpu.memory_space<smem>>) -> (i32, i32) {
    %c0_i32 = arith.constant 0 : i32
    %c0_i32_0 = arith.constant 0 : i32
    %c0_i32_1 = arith.constant 0 : i32
    return %c0_i32, %c0_i32_0 : i32, i32
  }
  func.func @transform_5(%arg0: i32, %arg1: memref<1xf32, #tpu.memory_space<smem>>) -> (i32, i32) {
    %c0_i32 = arith.constant 0 : i32
    %c0_i32_0 = arith.constant 0 : i32
    %c0_i32_1 = arith.constant 0 : i32
    return %c0_i32, %c0_i32_0 : i32, i32
  }
  func.func @transform_6(%arg0: i32, %arg1: memref<1xf32, #tpu.memory_space<smem>>) -> (i32, i32) {
    %c0_i32 = arith.constant 0 : i32
    %c0_i32_0 = arith.constant 0 : i32
    return %arg0, %c0_i32 : i32, i32
  }
}

</mosaic_0001>

<llo_original>
// kernel: tpu_custom_call.1
$region0: #{tpu_custom_call.1}
  #allocation0 [shape = 'u32[]', space=smem, size = 0x4, offset = 0x4, fixed_abs, tag = 'smem constant byte address 0x4 - core index']
  #allocation1 [shape = 'u32[144,128]{1,0:T(1,128)}', space=vmem, size = 0x12000, scoped, tag = 'internal scratch']
  #allocation2 [shape = 's32[1]{0}', space=sflag, size = 0x4, scoped, tag = 'scoped memory for tpu_custom_call.1']
  #allocation3 [shape = 'f32[1]{0:T(128)S(6)}', space=smem, size = 0x200, scoped, tag = 'prefetched SMEM operand 0']
  %s0 = inlined_call_operand.<no memory space> [shape: f32[1], index: 0, kind: input, shape index: {}]
  %s1 = inlined_call_operand.vmem [shape: f32[2,64], index: 1, kind: input, shape index: {}]
  %s2 = inlined_call_operand.hbm [shape: f32[2,32], index: 2, kind: input, shape index: {}]
  %s3 = inlined_call_operand.hbm [shape: f32[64,128], index: 3, kind: input, shape index: {}]
  %s4 = inlined_call_operand.hbm [shape: f32[32,128], index: 4, kind: input, shape index: {}]
  %s5 = inlined_call_operand.vmem [shape: f32[1,128], index: 5, kind: input, shape index: {}]
  %s6 = inlined_call_operand.vmem [shape: f32[1,128], index: 6, kind: input, shape index: {}]
  %s7 = inlined_call_operand.vmem [shape: f32[2,1], index: 7, kind: output, shape index: {}]
  %s8 = sld [smem:[#allocation0]]
  $region46: #{tpu_custom_call.1} parent=0
    _
  %s10 = ssub.s32 1, %s8
  %s11 = scalar_select 0, %s10, %s8
  %12 = sst [smem:[#allocation3]] %s0
  $region1: #{tpu_custom_call.1} parent=0
    #allocation4 [shape = 'u8[1024]{0}', space=vmem, size = 0x400, scoped, tag = 'input window, operand 2, single buffered']
    #allocation5 [shape = 's32[1]{0}', space=sflag, size = 0x4, scoped, tag = 'scoped memory for tpu_custom_call.1']
    #allocation6 [shape = 'u8[32768]{0}', space=vmem, size = 0x8000, scoped, tag = 'input window, operand 3, single buffered']
    #allocation7 [shape = 's32[1]{0}', space=sflag, size = 0x4, scoped, tag = 'scoped memory for tpu_custom_call.1']
    #allocation8 [shape = 'u8[16384]{0}', space=vmem, size = 0x4000, scoped, tag = 'input window, operand 4, single buffered']
    %13 = vsyncpa [#allocation5], 0
    %14 = vsyncpa [#allocation7], 0
    // Predicated region
    $region2: #{tpu_custom_call.1} parent=1 // pred_check
      _
    $region3: #{tpu_custom_call.1} parent=1 // pred_check_branch
      %16 = sbr.rel (0) target = $region5
    $region4: #{tpu_custom_call.1} parent=1 // pred_region
      _
    $region5: #{tpu_custom_call.1} parent=1 // pred_fallthru
      _
    // Predicated region
    $region6: #{tpu_custom_call.1} parent=1 // pred_check
      _
    $region7: #{tpu_custom_call.1} parent=1 // pred_check_branch
      %18 = sbr.rel (0) target = $region9
    $region8: #{tpu_custom_call.1} parent=1 // pred_region
      %s20 = ssub.s32 32, 32
      %21 = vsyncadd [#allocation5], %s20
      %s23 = sshll.u32 [#allocation4], 4
      %s24 = int_to_ptr.vmem [resolvable:$true] %s23
      %26 = dma.hbm_to_vmem [thread:$0]  %s2, 32, %s24, [#allocation5]
    $region9: #{tpu_custom_call.1} parent=1 // pred_fallthru
      _
    // Predicated region
    $region10: #{tpu_custom_call.1} parent=1 // pred_check
      _
    $region11: #{tpu_custom_call.1} parent=1 // pred_check_branch
      %28 = sbr.rel (0) target = $region13
    $region12: #{tpu_custom_call.1} parent=1 // pred_region
      %s30 = ssub.s32 1024, 1024
      %31 = vsyncadd [#allocation7], %s30
      %s32 = sshll.u32 [#allocation6], 4
      %s33 = int_to_ptr.vmem [resolvable:$true] %s32
      %38 = dma.hbm_to_vmem [thread:$0]  %s3, 1024, %s33, [#allocation7], 128, 128, 8
    $region13: #{tpu_custom_call.1} parent=1 // pred_fallthru
      _
    // Predicated region
    $region14: #{tpu_custom_call.1} parent=1 // pred_check
      _
    $region15: #{tpu_custom_call.1} parent=1 // pred_check_branch
      %40 = sbr.rel (0) target = $region17
    $region16: #{tpu_custom_call.1} parent=1 // pred_region
      %s42 = ssub.s32 512, 512
      %43 = vsyncadd [#allocation7], %s42
      %s44 = sshll.u32 [#allocation8], 4
      %s45 = int_to_ptr.vmem [resolvable:$true] %s44
      %50 = dma.hbm_to_vmem [thread:$0]  %s4, 512, %s45, [#allocation7], 128, 128, 8
    $region17: #{tpu_custom_call.1} parent=1 // pred_fallthru
      _
    // Predicated region
    $region18: #{tpu_custom_call.1} parent=1 // pred_check
      _
    $region19: #{tpu_custom_call.1} parent=1 // pred_check_branch
      %52 = sbr.rel (0) target = $region21
    $region20: #{tpu_custom_call.1} parent=1 // pred_region
      _
    $region21: #{tpu_custom_call.1} parent=1 // pred_fallthru
      _
    // Predicated region
    $region22: #{tpu_custom_call.1} parent=1 // pred_check
      _
    $region23: #{tpu_custom_call.1} parent=1 // pred_check_branch
      %54 = sbr.rel (0) target = $region25
    $region24: #{tpu_custom_call.1} parent=1 // pred_region
      _
    $region25: #{tpu_custom_call.1} parent=1 // pred_fallthru
      _
    // Predicated region
    $region26: #{tpu_custom_call.1} parent=1 // pred_check
      _
    $region27: #{tpu_custom_call.1} parent=1 // pred_check_branch
      %56 = sbr.rel (0) target = $region29
    $region28: #{tpu_custom_call.1} parent=1 // pred_region
      %57 = dma.done [#allocation5], 32
    $region29: #{tpu_custom_call.1} parent=1 // pred_fallthru
      _
    // Predicated region
    $region30: #{tpu_custom_call.1} parent=1 // pred_check
      _
    $region31: #{tpu_custom_call.1} parent=1 // pred_check_branch
      %59 = sbr.rel (0) target = $region33
    $region32: #{tpu_custom_call.1} parent=1 // pred_region
      %60 = dma.done [#allocation7], 1024
    $region33: #{tpu_custom_call.1} parent=1 // pred_fallthru
      _
    // Predicated region
    $region34: #{tpu_custom_call.1} parent=1 // pred_check
      _
    $region35: #{tpu_custom_call.1} parent=1 // pred_check_branch
      %62 = sbr.rel (0) target = $region37
    $region36: #{tpu_custom_call.1} parent=1 // pred_region
      %63 = dma.done [#allocation7], 512
    $region37: #{tpu_custom_call.1} parent=1 // pred_fallthru
      _
    %v64 = vld [vmem:[%s1] sm:$0x3]
    %v65 = vld [vmem:[#allocation4] sm:$0x3]
    %v66 = vld [vmem:[#allocation6] sm:$0xff]
    %v67 = vld [vmem:[#allocation6 + $0x8] sm:$0xff]
    %v68 = vld [vmem:[#allocation6 + $0x10] sm:$0xff]
    %v69 = vld [vmem:[#allocation6 + $0x18] sm:$0xff]
    %v70 = vld [vmem:[#allocation6 + $0x20] sm:$0xff]
    %v71 = vld [vmem:[#allocation6 + $0x28] sm:$0xff]
    %v72 = vld [vmem:[#allocation6 + $0x30] sm:$0xff]
    %v73 = vld [vmem:[#allocation6 + $0x38] sm:$0xff]
    %v74 = vld [vmem:[#allocation8] sm:$0xff]
    %v75 = vld [vmem:[#allocation8 + $0x8] sm:$0xff]
    %v76 = vld [vmem:[#allocation8 + $0x10] sm:$0xff]
    %v77 = vld [vmem:[#allocation8 + $0x18] sm:$0xff]
    %vm78 = vcmask 261120
    %v80 = vsel %vm78, %v65, 0
    %82 = vmatprep.subr.mxu0 0.0
    %83 = vmatpush1.msra.mxu0 0.0
    %84 = vmatprep.subr.mxu0 0.0
    %85 = vmatpush1.msra.mxu0 0.0
    %86 = vmatprep.subr.mxu0 0.0
    %87 = vmatpush1.msra.mxu0 0.0
    %88 = vmatprep.subr.mxu0 0.0
    %89 = vmatpush1.msra.mxu0 0.0
    %90 = vmatprep.subr.mxu0 0.0
    %91 = vmatpush1.msra.mxu0 0.0
    %92 = vmatprep.subr.mxu0 0.0
    %93 = vmatpush1.msra.mxu0 0.0
    %94 = vmatprep.subr.mxu0 0.0
    %95 = vmatpush1.msra.mxu0 0.0
    %96 = vmatprep.subr.mxu0 0.0
    %97 = vmatpush1.msra.mxu0 0.0
    %98 = vmatprep.subr.mxu0 0.0
    %99 = vmatpush1.msra.mxu0 0.0
    %100 = vmatprep.subr.mxu0 0.0
    %101 = vmatpush1.msra.mxu0 0.0
    %102 = vmatprep.subr.mxu0 0.0
    %103 = vmatpush1.msra.mxu0 0.0
    %104 = vmatprep.subr.mxu0 0.0
    %105 = vmatpush1.msra.mxu0 0.0
    %106 = vmatprep.subr.mxu0 0.0
    %v107 = vand.u32 %v77, 4294901760
    %108 = vmatpush1.msra.mxu0 %v107
    %109 = vmatprep.subr.mxu0 0.0
    %v110 = vand.u32 %v76, 4294901760
    %111 = vmatpush1.msra.mxu0 %v110
    %112 = vmatprep.subr.mxu0 0.0
    %v113 = vand.u32 %v75, 4294901760
    %114 = vmatpush1.msra.mxu0 %v113
    %115 = vmatprep.subr.mxu0 0.0
    %v116 = vand.u32 %v74, 4294901760
    %117 = vmatpush1.msra.mxu0 %v116
    %118 = vmatprep.subr.mxu0 0.0
    %119 = vmatpush2.msra.mxu0 0.0
    %120 = vmatprep.subr.mxu0 0.0
    %121 = vmatpush2.msra.mxu0 0.0
    %122 = vmatprep.subr.mxu0 0.0
    %123 = vmatpush2.msra.mxu0 0.0
    %124 = vmatprep.subr.mxu0 0.0
    %125 = vmatpush2.msra.mxu0 0.0
    %126 = vmatprep.subr.mxu0 0.0
    %127 = vmatpush2.msra.mxu0 0.0
    %128 = vmatprep.subr.mxu0 0.0
    %129 = vmatpush2.msra.mxu0 0.0
    %130 = vmatprep.subr.mxu0 0.0
    %131 = vmatpush2.msra.mxu0 0.0
    %132 = vmatprep.subr.mxu0 0.0
    %133 = vmatpush2.msra.mxu0 0.0
    %134 = vmatprep.subr.mxu0 0.0
    %135 = vmatpush2.msra.mxu0 0.0
    %136 = vmatprep.subr.mxu0 0.0
    %137 = vmatpush2.msra.mxu0 0.0
    %138 = vmatprep.subr.mxu0 0.0
    %139 = vmatpush2.msra.mxu0 0.0
    %140 = vmatprep.subr.mxu0 0.0
    %141 = vmatpush2.msra.mxu0 0.0
    %142 = vmatprep.subr.mxu0 0.0
    %143 = vmatpush2.msra.mxu0 0.0
    %144 = vmatprep.subr.mxu0 0.0
    %145 = vmatpush2.msra.mxu0 0.0
    %146 = vmatprep.subr.mxu0 0.0
    %147 = vmatpush2.msra.mxu0 0.0
    %148 = vmatprep.subr.mxu0 0.0
    %149 = vmatpush2.msra.mxu0 0.0
    %150 = vmatprep.mubr.f32.mxu0 0.0
    %v151 = vand.u32 %v80, 4294901760
    %v152 = vsub.f32 %v80, %v151
    %v153 = vand.u32 %v152, 4294901760
    %v154 = vsub.f32 %v152, %v153
    %v155 = vand.u32 %v154, 4294901760
    %156 = vmatmul.mubr.f32.gmra.mxu0 %v155
    %v157 = vpop.f32.mrf.mxu0
    %v158 = vadd.f32 0.0, %v157
    %v159 = vpop.f32.mrf.mxu0
    %160 = vdwg.mxu0
    %161 = vmatprep.subr.mxu0 0.0
    %162 = vmatpush1.msra.mxu0 0.0
    %163 = vmatprep.subr.mxu0 0.0
    %164 = vmatpush1.msra.mxu0 0.0
    %165 = vmatprep.subr.mxu0 0.0
    %166 = vmatpush1.msra.mxu0 0.0
    %167 = vmatprep.subr.mxu0 0.0
    %168 = vmatpush1.msra.mxu0 0.0
    %169 = vmatprep.subr.mxu0 0.0
    %170 = vmatpush1.msra.mxu0 0.0
    %171 = vmatprep.subr.mxu0 0.0
    %172 = vmatpush1.msra.mxu0 0.0
    %173 = vmatprep.subr.mxu0 0.0
    %174 = vmatpush1.msra.mxu0 0.0
    %175 = vmatprep.subr.mxu0 0.0
    %176 = vmatpush1.msra.mxu0 0.0
    %177 = vmatprep.subr.mxu0 0.0
    %178 = vmatpush1.msra.mxu0 0.0
    %179 = vmatprep.subr.mxu0 0.0
    %180 = vmatpush1.msra.mxu0 0.0
    %181 = vmatprep.subr.mxu0 0.0
    %182 = vmatpush1.msra.mxu0 0.0
    %183 = vmatprep.subr.mxu0 0.0
    %184 = vmatpush1.msra.mxu0 0.0
    %185 = vmatprep.subr.mxu0 0.0
    %v186 = vand.u32 %v77, 4294901760
    %v187 = vsub.f32 %v77, %v186
    %v188 = vand.u32 %v187, 4294901760
    %v189 = vsub.f32 %v187, %v188
    %v190 = vand.u32 %v189, 4294901760
    %191 = vmatpush1.msra.mxu0 %v190
    %192 = vmatprep.subr.mxu0 0.0
    %v193 = vand.u32 %v76, 4294901760
    %v194 = vsub.f32 %v76, %v193
    %v195 = vand.u32 %v194, 4294901760
    %v196 = vsub.f32 %v194, %v195
    %v197 = vand.u32 %v196, 4294901760
    %198 = vmatpush1.msra.mxu0 %v197
    %199 = vmatprep.subr.mxu0 0.0
    %v200 = vand.u32 %v75, 4294901760
    %v201 = vsub.f32 %v75, %v200
    %v202 = vand.u32 %v201, 4294901760
    %v203 = vsub.f32 %v201, %v202
    %v204 = vand.u32 %v203, 4294901760
    %205 = vmatpush1.msra.mxu0 %v204
    %206 = vmatprep.subr.mxu0 0.0
    %v207 = vand.u32 %v74, 4294901760
    %v208 = vsub.f32 %v74, %v207
    %v209 = vand.u32 %v208, 4294901760
    %v210 = vsub.f32 %v208, %v209
    %v211 = vand.u32 %v210, 4294901760
    %212 = vmatpush1.msra.mxu0 %v211
    %213 = vmatprep.subr.mxu0 0.0
    %214 = vmatpush2.msra.mxu0 0.0
    %215 = vmatprep.subr.mxu0 0.0
    %216 = vmatpush2.msra.mxu0 0.0
    %217 = vmatprep.subr.mxu0 0.0
    %218 = vmatpush2.msra.mxu0 0.0
    %219 = vmatprep.subr.mxu0 0.0
    %220 = vmatpush2.msra.mxu0 0.0
    %221 = vmatprep.subr.mxu0 0.0
    %222 = vmatpush2.msra.mxu0 0.0
    %223 = vmatprep.subr.mxu0 0.0
    %224 = vmatpush2.msra.mxu0 0.0
    %225 = vmatprep.subr.mxu0 0.0
    %226 = vmatpush2.msra.mxu0 0.0
    %227 = vmatprep.subr.mxu0 0.0
    %228 = vmatpush2.msra.mxu0 0.0
    %229 = vmatprep.subr.mxu0 0.0
    %230 = vmatpush2.msra.mxu0 0.0
    %231 = vmatprep.subr.mxu0 0.0
    %232 = vmatpush2.msra.mxu0 0.0
    %233 = vmatprep.subr.mxu0 0.0
    %234 = vmatpush2.msra.mxu0 0.0
    %235 = vmatprep.subr.mxu0 0.0
    %236 = vmatpush2.msra.mxu0 0.0
    %237 = vmatprep.subr.mxu0 0.0
    %238 = vmatpush2.msra.mxu0 0.0
    %239 = vmatprep.subr.mxu0 0.0
    %240 = vmatpush2.msra.mxu0 0.0
    %241 = vmatprep.subr.mxu0 0.0
    %242 = vmatpush2.msra.mxu0 0.0
    %243 = vmatprep.subr.mxu0 0.0
    %244 = vmatpush2.msra.mxu0 0.0
    %245 = vmatprep.mubr.f32.mxu0 0.0
    %v246 = vand.u32 %v80, 4294901760
    %247 = vmatmul.mubr.f32.gmra.mxu0 %v246
    %v248 = vpop.f32.mrf.mxu0
    %v249 = vadd.f32 %v158, %v248
    %v250 = vpop.f32.mrf.mxu0
    %251 = vdwg.mxu0
    %252 = vmatprep.subr.mxu0 0.0
    %253 = vmatpush1.msra.mxu0 0.0
    %254 = vmatprep.subr.mxu0 0.0
    %255 = vmatpush1.msra.mxu0 0.0
    %256 = vmatprep.subr.mxu0 0.0
    %257 = vmatpush1.msra.mxu0 0.0
    %258 = vmatprep.subr.mxu0 0.0
    %259 = vmatpush1.msra.mxu0 0.0
    %260 = vmatprep.subr.mxu0 0.0
    %261 = vmatpush1.msra.mxu0 0.0
    %262 = vmatprep.subr.mxu0 0.0
    %263 = vmatpush1.msra.mxu0 0.0
    %264 = vmatprep.subr.mxu0 0.0
    %265 = vmatpush1.msra.mxu0 0.0
    %266 = vmatprep.subr.mxu0 0.0
    %267 = vmatpush1.msra.mxu0 0.0
    %268 = vmatprep.subr.mxu0 0.0
    %269 = vmatpush1.msra.mxu0 0.0
    %270 = vmatprep.subr.mxu0 0.0
    %271 = vmatpush1.msra.mxu0 0.0
    %272 = vmatprep.subr.mxu0 0.0
    %273 = vmatpush1.msra.mxu0 0.0
    %274 = vmatprep.subr.mxu0 0.0
    %275 = vmatpush1.msra.mxu0 0.0
    %276 = vmatprep.subr.mxu0 0.0
    %v277 = vand.u32 %v77, 4294901760
    %v278 = vsub.f32 %v77, %v277
    %279 = vmatpush1.msra.mxu0 %v278
    %280 = vmatprep.subr.mxu0 0.0
    %v281 = vand.u32 %v76, 4294901760
    %v282 = vsub.f32 %v76, %v281
    %283 = vmatpush1.msra.mxu0 %v282
    %284 = vmatprep.subr.mxu0 0.0
    %v285 = vand.u32 %v75, 4294901760
    %v286 = vsub.f32 %v75, %v285
    %287 = vmatpush1.msra.mxu0 %v286
    %288 = vmatprep.subr.mxu0 0.0
    %v289 = vand.u32 %v74, 4294901760
    %v290 = vsub.f32 %v74, %v289
    %291 = vmatpush1.msra.mxu0 %v290
    %292 = vmatprep.subr.mxu0 0.0
    %293 = vmatpush2.msra.mxu0 0.0
    %294 = vmatprep.subr.mxu0 0.0
    %295 = vmatpush2.msra.mxu0 0.0
    %296 = vmatprep.subr.mxu0 0.0
    %297 = vmatpush2.msra.mxu0 0.0
    %298 = vmatprep.subr.mxu0 0.0
    %299 = vmatpush2.msra.mxu0 0.0
    %300 = vmatprep.subr.mxu0 0.0
    %301 = vmatpush2.msra.mxu0 0.0
    %302 = vmatprep.subr.mxu0 0.0
    %303 = vmatpush2.msra.mxu0 0.0
    %304 = vmatprep.subr.mxu0 0.0
    %305 = vmatpush2.msra.mxu0 0.0
    %306 = vmatprep.subr.mxu0 0.0
    %307 = vmatpush2.msra.mxu0 0.0
    %308 = vmatprep.subr.mxu0 0.0
    %309 = vmatpush2.msra.mxu0 0.0
    %310 = vmatprep.subr.mxu0 0.0
    %311 = vmatpush2.msra.mxu0 0.0
    %312 = vmatprep.subr.mxu0 0.0
    %313 = vmatpush2.msra.mxu0 0.0
    %314 = vmatprep.subr.mxu0 0.0
    %315 = vmatpush2.msra.mxu0 0.0
    %316 = vmatprep.subr.mxu0 0.0
    %317 = vmatpush2.msra.mxu0 0.0
    %318 = vmatprep.subr.mxu0 0.0
    %319 = vmatpush2.msra.mxu0 0.0
    %320 = vmatprep.subr.mxu0 0.0
    %321 = vmatpush2.msra.mxu0 0.0
    %322 = vmatprep.subr.mxu0 0.0
    %323 = vmatpush2.msra.mxu0 0.0
    %324 = vmatprep.mubr.f32.mxu0 0.0
    %v325 = vand.u32 %v80, 4294901760
    %v326 = vsub.f32 %v80, %v325
    %327 = vmatmul.mubr.f32.gmra.mxu0 %v326
    %v328 = vpop.f32.mrf.mxu0
    %v329 = vadd.f32 %v249, %v328
    %v330 = vpop.f32.mrf.mxu0
    %331 = vdwg.mxu0
    %332 = vmatprep.subr.mxu0 0.0
    %333 = vmatpush1.msra.mxu0 0.0
    %334 = vmatprep.subr.mxu0 0.0
    %335 = vmatpush1.msra.mxu0 0.0
    %336 = vmatprep.subr.mxu0 0.0
    %337 = vmatpush1.msra.mxu0 0.0
    %338 = vmatprep.subr.mxu0 0.0
    %339 = vmatpush1.msra.mxu0 0.0
    %340 = vmatprep.subr.mxu0 0.0
    %341 = vmatpush1.msra.mxu0 0.0
    %342 = vmatprep.subr.mxu0 0.0
    %343 = vmatpush1.msra.mxu0 0.0
    %344 = vmatprep.subr.mxu0 0.0
    %345 = vmatpush1.msra.mxu0 0.0
    %346 = vmatprep.subr.mxu0 0.0
    %347 = vmatpush1.msra.mxu0 0.0
    %348 = vmatprep.subr.mxu0 0.0
    %349 = vmatpush1.msra.mxu0 0.0
    %350 = vmatprep.subr.mxu0 0.0
    %351 = vmatpush1.msra.mxu0 0.0
    %352 = vmatprep.subr.mxu0 0.0
    %353 = vmatpush1.msra.mxu0 0.0
    %354 = vmatprep.subr.mxu0 0.0
    %355 = vmatpush1.msra.mxu0 0.0
    %356 = vmatprep.subr.mxu0 0.0
    %v357 = vand.u32 %v77, 4294901760
    %358 = vmatpush1.msra.mxu0 %v357
    %359 = vmatprep.subr.mxu0 0.0
    %v360 = vand.u32 %v76, 4294901760
    %361 = vmatpush1.msra.mxu0 %v360
    %362 = vmatprep.subr.mxu0 0.0
    %v363 = vand.u32 %v75, 4294901760
    %364 = vmatpush1.msra.mxu0 %v363
    %365 = vmatprep.subr.mxu0 0.0
    %v366 = vand.u32 %v74, 4294901760
    %367 = vmatpush1.msra.mxu0 %v366
    %368 = vmatprep.subr.mxu0 0.0
    %369 = vmatpush2.msra.mxu0 0.0
    %370 = vmatprep.subr.mxu0 0.0
    %371 = vmatpush2.msra.mxu0 0.0
    %372 = vmatprep.subr.mxu0 0.0
    %373 = vmatpush2.msra.mxu0 0.0
    %374 = vmatprep.subr.mxu0 0.0
    %375 = vmatpush2.msra.mxu0 0.0
    %376 = vmatprep.subr.mxu0 0.0
    %377 = vmatpush2.msra.mxu0 0.0
    %378 = vmatprep.subr.mxu0 0.0
    %379 = vmatpush2.msra.mxu0 0.0
    %380 = vmatprep.subr.mxu0 0.0
    %381 = vmatpush2.msra.mxu0 0.0
    %382 = vmatprep.subr.mxu0 0.0
    %383 = vmatpush2.msra.mxu0 0.0
    %384 = vmatprep.subr.mxu0 0.0
    %385 = vmatpush2.msra.mxu0 0.0
    %386 = vmatprep.subr.mxu0 0.0
    %387 = vmatpush2.msra.mxu0 0.0
    %388 = vmatprep.subr.mxu0 0.0
    %389 = vmatpush2.msra.mxu0 0.0
    %390 = vmatprep.subr.mxu0 0.0
    %391 = vmatpush2.msra.mxu0 0.0
    %392 = vmatprep.subr.mxu0 0.0
    %393 = vmatpush2.msra.mxu0 0.0
    %394 = vmatprep.subr.mxu0 0.0
    %395 = vmatpush2.msra.mxu0 0.0
    %396 = vmatprep.subr.mxu0 0.0
    %397 = vmatpush2.msra.mxu0 0.0
    %398 = vmatprep.subr.mxu0 0.0
    %399 = vmatpush2.msra.mxu0 0.0
    %400 = vmatprep.mubr.f32.mxu0 0.0
    %v401 = vand.u32 %v80, 4294901760
    %v402 = vsub.f32 %v80, %v401
    %v403 = vand.u32 %v402, 4294901760
    %404 = vmatmul.mubr.f32.gmra.mxu0 %v403
    %v405 = vpop.f32.mrf.mxu0
    %v406 = vadd.f32 %v329, %v405
    %v407 = vpop.f32.mrf.mxu0
    %408 = vdwg.mxu0
    %409 = vmatprep.subr.mxu0 0.0
    %410 = vmatpush1.msra.mxu0 0.0
    %411 = vmatprep.subr.mxu0 0.0
    %412 = vmatpush1.msra.mxu0 0.0
    %413 = vmatprep.subr.mxu0 0.0
    %414 = vmatpush1.msra.mxu0 0.0
    %415 = vmatprep.subr.mxu0 0.0
    %416 = vmatpush1.msra.mxu0 0.0
    %417 = vmatprep.subr.mxu0 0.0
    %418 = vmatpush1.msra.mxu0 0.0
    %419 = vmatprep.subr.mxu0 0.0
    %420 = vmatpush1.msra.mxu0 0.0
    %421 = vmatprep.subr.mxu0 0.0
    %422 = vmatpush1.msra.mxu0 0.0
    %423 = vmatprep.subr.mxu0 0.0
    %424 = vmatpush1.msra.mxu0 0.0
    %425 = vmatprep.subr.mxu0 0.0
    %426 = vmatpush1.msra.mxu0 0.0
    %427 = vmatprep.subr.mxu0 0.0
    %428 = vmatpush1.msra.mxu0 0.0
    %429 = vmatprep.subr.mxu0 0.0
    %430 = vmatpush1.msra.mxu0 0.0
    %431 = vmatprep.subr.mxu0 0.0
    %432 = vmatpush1.msra.mxu0 0.0
    %433 = vmatprep.subr.mxu0 0.0
    %v434 = vand.u32 %v77, 4294901760
    %v435 = vsub.f32 %v77, %v434
    %v436 = vand.u32 %v435, 4294901760
    %437 = vmatpush1.msra.mxu0 %v436
    %438 = vmatprep.subr.mxu0 0.0
    %v439 = vand.u32 %v76, 4294901760
    %v440 = vsub.f32 %v76, %v439
    %v441 = vand.u32 %v440, 4294901760
    %442 = vmatpush1.msra.mxu0 %v441
    %443 = vmatprep.subr.mxu0 0.0
    %v444 = vand.u32 %v75, 4294901760
    %v445 = vsub.f32 %v75, %v444
    %v446 = vand.u32 %v445, 4294901760
    %447 = vmatpush1.msra.mxu0 %v446
    %448 = vmatprep.subr.mxu0 0.0
    %v449 = vand.u32 %v74, 4294901760
    %v450 = vsub.f32 %v74, %v449
    %v451 = vand.u32 %v450, 4294901760
    %452 = vmatpush1.msra.mxu0 %v451
    %453 = vmatprep.subr.mxu0 0.0
    %454 = vmatpush2.msra.mxu0 0.0
    %455 = vmatprep.subr.mxu0 0.0
    %456 = vmatpush2.msra.mxu0 0.0
    %457 = vmatprep.subr.mxu0 0.0
    %458 = vmatpush2.msra.mxu0 0.0
    %459 = vmatprep.subr.mxu0 0.0
    %460 = vmatpush2.msra.mxu0 0.0
    %461 = vmatprep.subr.mxu0 0.0
    %462 = vmatpush2.msra.mxu0 0.0
    %463 = vmatprep.subr.mxu0 0.0
    %464 = vmatpush2.msra.mxu0 0.0
    %465 = vmatprep.subr.mxu0 0.0
    %466 = vmatpush2.msra.mxu0 0.0
    %467 = vmatprep.subr.mxu0 0.0
    %468 = vmatpush2.msra.mxu0 0.0
    %469 = vmatprep.subr.mxu0 0.0
    %470 = vmatpush2.msra.mxu0 0.0
    %471 = vmatprep.subr.mxu0 0.0
    %472 = vmatpush2.msra.mxu0 0.0
    %473 = vmatprep.subr.mxu0 0.0
    %474 = vmatpush2.msra.mxu0 0.0
    %475 = vmatprep.subr.mxu0 0.0
    %476 = vmatpush2.msra.mxu0 0.0
    %477 = vmatprep.subr.mxu0 0.0
    %478 = vmatpush2.msra.mxu0 0.0
    %479 = vmatprep.subr.mxu0 0.0
    %480 = vmatpush2.msra.mxu0 0.0
    %481 = vmatprep.subr.mxu0 0.0
    %482 = vmatpush2.msra.mxu0 0.0
    %483 = vmatprep.subr.mxu0 0.0
    %484 = vmatpush2.msra.mxu0 0.0
    %485 = vmatprep.mubr.f32.mxu0 0.0
    %v486 = vand.u32 %v80, 4294901760
    %487 = vmatmul.mubr.f32.gmra.mxu0 %v486
    %v488 = vpop.f32.mrf.mxu0
    %v489 = vadd.f32 %v406, %v488
    %v490 = vpop.f32.mrf.mxu0
    %491 = vdwg.mxu0
    %492 = vmatprep.subr.mxu0 0.0
    %493 = vmatpush1.msra.mxu0 0.0
    %494 = vmatprep.subr.mxu0 0.0
    %495 = vmatpush1.msra.mxu0 0.0
    %496 = vmatprep.subr.mxu0 0.0
    %497 = vmatpush1.msra.mxu0 0.0
    %498 = vmatprep.subr.mxu0 0.0
    %499 = vmatpush1.msra.mxu0 0.0
    %500 = vmatprep.subr.mxu0 0.0
    %501 = vmatpush1.msra.mxu0 0.0
    %502 = vmatprep.subr.mxu0 0.0
    %503 = vmatpush1.msra.mxu0 0.0
    %504 = vmatprep.subr.mxu0 0.0
    %505 = vmatpush1.msra.mxu0 0.0
    %506 = vmatprep.subr.mxu0 0.0
    %507 = vmatpush1.msra.mxu0 0.0
    %508 = vmatprep.subr.mxu0 0.0
    %509 = vmatpush1.msra.mxu0 0.0
    %510 = vmatprep.subr.mxu0 0.0
    %511 = vmatpush1.msra.mxu0 0.0
    %512 = vmatprep.subr.mxu0 0.0
    %513 = vmatpush1.msra.mxu0 0.0
    %514 = vmatprep.subr.mxu0 0.0
    %515 = vmatpush1.msra.mxu0 0.0
    %516 = vmatprep.subr.mxu0 0.0
    %v517 = vand.u32 %v77, 4294901760
    %518 = vmatpush1.msra.mxu0 %v517
    %519 = vmatprep.subr.mxu0 0.0
    %v520 = vand.u32 %v76, 4294901760
    %521 = vmatpush1.msra.mxu0 %v520
    %522 = vmatprep.subr.mxu0 0.0
    %v523 = vand.u32 %v75, 4294901760
    %524 = vmatpush1.msra.mxu0 %v523
    %525 = vmatprep.subr.mxu0 0.0
    %v526 = vand.u32 %v74, 4294901760
    %527 = vmatpush1.msra.mxu0 %v526
    %528 = vmatprep.subr.mxu0 0.0
    %529 = vmatpush2.msra.mxu0 0.0
    %530 = vmatprep.subr.mxu0 0.0
    %531 = vmatpush2.msra.mxu0 0.0
    %532 = vmatprep.subr.mxu0 0.0
    %533 = vmatpush2.msra.mxu0 0.0
    %534 = vmatprep.subr.mxu0 0.0
    %535 = vmatpush2.msra.mxu0 0.0
    %536 = vmatprep.subr.mxu0 0.0
    %537 = vmatpush2.msra.mxu0 0.0
    %538 = vmatprep.subr.mxu0 0.0
    %539 = vmatpush2.msra.mxu0 0.0
    %540 = vmatprep.subr.mxu0 0.0
    %541 = vmatpush2.msra.mxu0 0.0
    %542 = vmatprep.subr.mxu0 0.0
    %543 = vmatpush2.msra.mxu0 0.0
    %544 = vmatprep.subr.mxu0 0.0
    %545 = vmatpush2.msra.mxu0 0.0
    %546 = vmatprep.subr.mxu0 0.0
    %547 = vmatpush2.msra.mxu0 0.0
    %548 = vmatprep.subr.mxu0 0.0
    %549 = vmatpush2.msra.mxu0 0.0
    %550 = vmatprep.subr.mxu0 0.0
    %551 = vmatpush2.msra.mxu0 0.0
    %552 = vmatprep.subr.mxu0 0.0
    %553 = vmatpush2.msra.mxu0 0.0
    %554 = vmatprep.subr.mxu0 0.0
    %555 = vmatpush2.msra.mxu0 0.0
    %556 = vmatprep.subr.mxu0 0.0
    %557 = vmatpush2.msra.mxu0 0.0
    %558 = vmatprep.subr.mxu0 0.0
    %559 = vmatpush2.msra.mxu0 0.0
    %560 = vmatprep.mubr.f32.mxu0 0.0
    %v561 = vand.u32 %v80, 4294901760
    %562 = vmatmul.mubr.f32.gmra.mxu0 %v561
    %v563 = vpop.f32.mrf.mxu0
    %v564 = vadd.f32 %v489, %v563
    %v565 = vpop.f32.mrf.mxu0
    %566 = vdwg.mxu0
    %vm567 = vcmask 523264
    %v569 = vsel %vm567, %v64, 0
    %571 = vmatprep.subr.mxu0 0.0
    %572 = vmatpush1.msra.mxu0 0.0
    %573 = vmatprep.subr.mxu0 0.0
    %574 = vmatpush1.msra.mxu0 0.0
    %575 = vmatprep.subr.mxu0 0.0
    %576 = vmatpush1.msra.mxu0 0.0
    %577 = vmatprep.subr.mxu0 0.0
    %578 = vmatpush1.msra.mxu0 0.0
    %579 = vmatprep.subr.mxu0 0.0
    %580 = vmatpush1.msra.mxu0 0.0
    %581 = vmatprep.subr.mxu0 0.0
    %582 = vmatpush1.msra.mxu0 0.0
    %583 = vmatprep.subr.mxu0 0.0
    %584 = vmatpush1.msra.mxu0 0.0
    %585 = vmatprep.subr.mxu0 0.0
    %586 = vmatpush1.msra.mxu0 0.0
    %587 = vmatprep.subr.mxu0 0.0
    %v588 = vand.u32 %v73, 4294901760
    %589 = vmatpush1.msra.mxu0 %v588
    %590 = vmatprep.subr.mxu0 0.0
    %v591 = vand.u32 %v72, 4294901760
    %592 = vmatpush1.msra.mxu0 %v591
    %593 = vmatprep.subr.mxu0 0.0
    %v594 = vand.u32 %v71, 4294901760
    %595 = vmatpush1.msra.mxu0 %v594
    %596 = vmatprep.subr.mxu0 0.0
    %v597 = vand.u32 %v70, 4294901760
    %598 = vmatpush1.msra.mxu0 %v597
    %599 = vmatprep.subr.mxu0 0.0
    %v600 = vand.u32 %v69, 4294901760
    %601 = vmatpush1.msra.mxu0 %v600
    %602 = vmatprep.subr.mxu0 0.0
    %v603 = vand.u32 %v68, 4294901760
    %604 = vmatpush1.msra.mxu0 %v603
    %605 = vmatprep.subr.mxu0 0.0
    %v606 = vand.u32 %v67, 4294901760
    %607 = vmatpush1.msra.mxu0 %v606
    %608 = vmatprep.subr.mxu0 0.0
    %v609 = vand.u32 %v66, 4294901760
    %610 = vmatpush1.msra.mxu0 %v609
    %611 = vmatprep.subr.mxu0 0.0
    %612 = vmatpush2.msra.mxu0 0.0
    %613 = vmatprep.subr.mxu0 0.0
    %614 = vmatpush2.msra.mxu0 0.0
    %615 = vmatprep.subr.mxu0 0.0
    %616 = vmatpush2.msra.mxu0 0.0
    %617 = vmatprep.subr.mxu0 0.0
    %618 = vmatpush2.msra.mxu0 0.0
    %619 = vmatprep.subr.mxu0 0.0
    %620 = vmatpush2.msra.mxu0 0.0
    %621 = vmatprep.subr.mxu0 0.0
    %622 = vmatpush2.msra.mxu0 0.0
    %623 = vmatprep.subr.mxu0 0.0
    %624 = vmatpush2.msra.mxu0 0.0
    %625 = vmatprep.subr.mxu0 0.0
    %626 = vmatpush2.msra.mxu0 0.0
    %627 = vmatprep.subr.mxu0 0.0
    %628 = vmatpush2.msra.mxu0 0.0
    %629 = vmatprep.subr.mxu0 0.0
    %630 = vmatpush2.msra.mxu0 0.0
    %631 = vmatprep.subr.mxu0 0.0
    %632 = vmatpush2.msra.mxu0 0.0
    %633 = vmatprep.subr.mxu0 0.0
    %634 = vmatpush2.msra.mxu0 0.0
    %635 = vmatprep.subr.mxu0 0.0
    %636 = vmatpush2.msra.mxu0 0.0
    %637 = vmatprep.subr.mxu0 0.0
    %638 = vmatpush2.msra.mxu0 0.0
    %639 = vmatprep.subr.mxu0 0.0
    %640 = vmatpush2.msra.mxu0 0.0
    %641 = vmatprep.subr.mxu0 0.0
    %642 = vmatpush2.msra.mxu0 0.0
    %643 = vmatprep.mubr.f32.mxu0 0.0
    %v644 = vand.u32 %v569, 4294901760
    %v645 = vsub.f32 %v569, %v644
    %v646 = vand.u32 %v645, 4294901760
    %v647 = vsub.f32 %v645, %v646
    %v648 = vand.u32 %v647, 4294901760
    %649 = vmatmul.mubr.f32.gmra.mxu0 %v648
    %v650 = vpop.f32.mrf.mxu0
    %v651 = vadd.f32 %v564, %v650
    %v652 = vpop.f32.mrf.mxu0
    %653 = vdwg.mxu0
    %654 = vmatprep.subr.mxu0 0.0
    %655 = vmatpush1.msra.mxu0 0.0
    %656 = vmatprep.subr.mxu0 0.0
    %657 = vmatpush1.msra.mxu0 0.0
    %658 = vmatprep.subr.mxu0 0.0
    %659 = vmatpush1.msra.mxu0 0.0
    %660 = vmatprep.subr.mxu0 0.0
    %661 = vmatpush1.msra.mxu0 0.0
    %662 = vmatprep.subr.mxu0 0.0
    %663 = vmatpush1.msra.mxu0 0.0
    %664 = vmatprep.subr.mxu0 0.0
    %665 = vmatpush1.msra.mxu0 0.0
    %666 = vmatprep.subr.mxu0 0.0
    %667 = vmatpush1.msra.mxu0 0.0
    %668 = vmatprep.subr.mxu0 0.0
    %669 = vmatpush1.msra.mxu0 0.0
    %670 = vmatprep.subr.mxu0 0.0
    %v671 = vand.u32 %v73, 4294901760
    %v672 = vsub.f32 %v73, %v671
    %v673 = vand.u32 %v672, 4294901760
    %v674 = vsub.f32 %v672, %v673
    %v675 = vand.u32 %v674, 4294901760
    %676 = vmatpush1.msra.mxu0 %v675
    %677 = vmatprep.subr.mxu0 0.0
    %v678 = vand.u32 %v72, 4294901760
    %v679 = vsub.f32 %v72, %v678
    %v680 = vand.u32 %v679, 4294901760
    %v681 = vsub.f32 %v679, %v680
    %v682 = vand.u32 %v681, 4294901760
    %683 = vmatpush1.msra.mxu0 %v682
    %684 = vmatprep.subr.mxu0 0.0
    %v685 = vand.u32 %v71, 4294901760
    %v686 = vsub.f32 %v71, %v685
    %v687 = vand.u32 %v686, 4294901760
    %v688 = vsub.f32 %v686, %v687
    %v689 = vand.u32 %v688, 4294901760
    %690 = vmatpush1.msra.mxu0 %v689
    %691 = vmatprep.subr.mxu0 0.0
    %v692 = vand.u32 %v70, 4294901760
    %v693 = vsub.f32 %v70, %v692
    %v694 = vand.u32 %v693, 4294901760
    %v695 = vsub.f32 %v693, %v694
    %v696 = vand.u32 %v695, 4294901760
    %697 = vmatpush1.msra.mxu0 %v696
    %698 = vmatprep.subr.mxu0 0.0
    %v699 = vand.u32 %v69, 4294901760
    %v700 = vsub.f32 %v69, %v699
    %v701 = vand.u32 %v700, 4294901760
    %v702 = vsub.f32 %v700, %v701
    %v703 = vand.u32 %v702, 4294901760
    %704 = vmatpush1.msra.mxu0 %v703
    %705 = vmatprep.subr.mxu0 0.0
    %v706 = vand.u32 %v68, 4294901760
    %v707 = vsub.f32 %v68, %v706
    %v708 = vand.u32 %v707, 4294901760
    %v709 = vsub.f32 %v707, %v708
    %v710 = vand.u32 %v709, 4294901760
    %711 = vmatpush1.msra.mxu0 %v710
    %712 = vmatprep.subr.mxu0 0.0
    %v713 = vand.u32 %v67, 4294901760
    %v714 = vsub.f32 %v67, %v713
    %v715 = vand.u32 %v714, 4294901760
    %v716 = vsub.f32 %v714, %v715
    %v717 = vand.u32 %v716, 4294901760
    %718 = vmatpush1.msra.mxu0 %v717
    %719 = vmatprep.subr.mxu0 0.0
    %v720 = vand.u32 %v66, 4294901760
    %v721 = vsub.f32 %v66, %v720
    %v722 = vand.u32 %v721, 4294901760
    %v723 = vsub.f32 %v721, %v722
    %v724 = vand.u32 %v723, 4294901760
    %725 = vmatpush1.msra.mxu0 %v724
    %726 = vmatprep.subr.mxu0 0.0
    %727 = vmatpush2.msra.mxu0 0.0
    %728 = vmatprep.subr.mxu0 0.0
    %729 = vmatpush2.msra.mxu0 0.0
    %730 = vmatprep.subr.mxu0 0.0
    %731 = vmatpush2.msra.mxu0 0.0
    %732 = vmatprep.subr.mxu0 0.0
    %733 = vmatpush2.msra.mxu0 0.0
    %734 = vmatprep.subr.mxu0 0.0
    %735 = vmatpush2.msra.mxu0 0.0
    %736 = vmatprep.subr.mxu0 0.0
    %737 = vmatpush2.msra.mxu0 0.0
    %738 = vmatprep.subr.mxu0 0.0
    %739 = vmatpush2.msra.mxu0 0.0
    %740 = vmatprep.subr.mxu0 0.0
    %741 = vmatpush2.msra.mxu0 0.0
    %742 = vmatprep.subr.mxu0 0.0
    %743 = vmatpush2.msra.mxu0 0.0
    %744 = vmatprep.subr.mxu0 0.0
    %745 = vmatpush2.msra.mxu0 0.0
    %746 = vmatprep.subr.mxu0 0.0
    %747 = vmatpush2.msra.mxu0 0.0
    %748 = vmatprep.subr.mxu0 0.0
    %749 = vmatpush2.msra.mxu0 0.0
    %750 = vmatprep.subr.mxu0 0.0
    %751 = vmatpush2.msra.mxu0 0.0
    %752 = vmatprep.subr.mxu0 0.0
    %753 = vmatpush2.msra.mxu0 0.0
    %754 = vmatprep.subr.mxu0 0.0
    %755 = vmatpush2.msra.mxu0 0.0
    %756 = vmatprep.subr.mxu0 0.0
    %757 = vmatpush2.msra.mxu0 0.0
    %758 = vmatprep.mubr.f32.mxu0 0.0
    %v759 = vand.u32 %v569, 4294901760
    %760 = vmatmul.mubr.f32.gmra.mxu0 %v759
    %v761 = vpop.f32.mrf.mxu0
    %v762 = vadd.f32 %v651, %v761
    %v763 = vpop.f32.mrf.mxu0
    %764 = vdwg.mxu0
    %765 = vmatprep.subr.mxu0 0.0
    %766 = vmatpush1.msra.mxu0 0.0
    %767 = vmatprep.subr.mxu0 0.0
    %768 = vmatpush1.msra.mxu0 0.0
    %769 = vmatprep.subr.mxu0 0.0
    %770 = vmatpush1.msra.mxu0 0.0
    %771 = vmatprep.subr.mxu0 0.0
    %772 = vmatpush1.msra.mxu0 0.0
    %773 = vmatprep.subr.mxu0 0.0
    %774 = vmatpush1.msra.mxu0 0.0
    %775 = vmatprep.subr.mxu0 0.0
    %776 = vmatpush1.msra.mxu0 0.0
    %777 = vmatprep.subr.mxu0 0.0
    %778 = vmatpush1.msra.mxu0 0.0
    %779 = vmatprep.subr.mxu0 0.0
    %780 = vmatpush1.msra.mxu0 0.0
    %781 = vmatprep.subr.mxu0 0.0
    %v782 = vand.u32 %v73, 4294901760
    %v783 = vsub.f32 %v73, %v782
    %784 = vmatpush1.msra.mxu0 %v783
    %785 = vmatprep.subr.mxu0 0.0
    %v786 = vand.u32 %v72, 4294901760
    %v787 = vsub.f32 %v72, %v786
    %788 = vmatpush1.msra.mxu0 %v787
    %789 = vmatprep.subr.mxu0 0.0
    %v790 = vand.u32 %v71, 4294901760
    %v791 = vsub.f32 %v71, %v790
    %792 = vmatpush1.msra.mxu0 %v791
    %793 = vmatprep.subr.mxu0 0.0
    %v794 = vand.u32 %v70, 4294901760
    %v795 = vsub.f32 %v70, %v794
    %796 = vmatpush1.msra.mxu0 %v795
    %797 = vmatprep.subr.mxu0 0.0
    %v798 = vand.u32 %v69, 4294901760
    %v799 = vsub.f32 %v69, %v798
    %800 = vmatpush1.msra.mxu0 %v799
    %801 = vmatprep.subr.mxu0 0.0
    %v802 = vand.u32 %v68, 4294901760
    %v803 = vsub.f32 %v68, %v802
    %804 = vmatpush1.msra.mxu0 %v803
    %805 = vmatprep.subr.mxu0 0.0
    %v806 = vand.u32 %v67, 4294901760
    %v807 = vsub.f32 %v67, %v806
    %808 = vmatpush1.msra.mxu0 %v807
    %809 = vmatprep.subr.mxu0 0.0
    %v810 = vand.u32 %v66, 4294901760
    %v811 = vsub.f32 %v66, %v810
    %812 = vmatpush1.msra.mxu0 %v811
    %813 = vmatprep.subr.mxu0 0.0
    %814 = vmatpush2.msra.mxu0 0.0
    %815 = vmatprep.subr.mxu0 0.0
    %816 = vmatpush2.msra.mxu0 0.0
    %817 = vmatprep.subr.mxu0 0.0
    %818 = vmatpush2.msra.mxu0 0.0
    %819 = vmatprep.subr.mxu0 0.0
    %820 = vmatpush2.msra.mxu0 0.0
    %821 = vmatprep.subr.mxu0 0.0
    %822 = vmatpush2.msra.mxu0 0.0
    %823 = vmatprep.subr.mxu0 0.0
    %824 = vmatpush2.msra.mxu0 0.0
    %825 = vmatprep.subr.mxu0 0.0
    %826 = vmatpush2.msra.mxu0 0.0
    %827 = vmatprep.subr.mxu0 0.0
    %828 = vmatpush2.msra.mxu0 0.0
    %829 = vmatprep.subr.mxu0 0.0
    %830 = vmatpush2.msra.mxu0 0.0
    %831 = vmatprep.subr.mxu0 0.0
    %832 = vmatpush2.msra.mxu0 0.0
    %833 = vmatprep.subr.mxu0 0.0
    %834 = vmatpush2.msra.mxu0 0.0
    %835 = vmatprep.subr.mxu0 0.0
    %836 = vmatpush2.msra.mxu0 0.0
    %837 = vmatprep.subr.mxu0 0.0
    %838 = vmatpush2.msra.mxu0 0.0
    %839 = vmatprep.subr.mxu0 0.0
    %840 = vmatpush2.msra.mxu0 0.0
    %841 = vmatprep.subr.mxu0 0.0
    %842 = vmatpush2.msra.mxu0 0.0
    %843 = vmatprep.subr.mxu0 0.0
    %844 = vmatpush2.msra.mxu0 0.0
    %845 = vmatprep.mubr.f32.mxu0 0.0
    %v846 = vand.u32 %v569, 4294901760
    %v847 = vsub.f32 %v569, %v846
    %848 = vmatmul.mubr.f32.gmra.mxu0 %v847
    %v849 = vpop.f32.mrf.mxu0
    %v850 = vadd.f32 %v762, %v849
    %v851 = vpop.f32.mrf.mxu0
    %852 = vdwg.mxu0
    %853 = vmatprep.subr.mxu0 0.0
    %854 = vmatpush1.msra.mxu0 0.0
    %855 = vmatprep.subr.mxu0 0.0
    %856 = vmatpush1.msra.mxu0 0.0
    %857 = vmatprep.subr.mxu0 0.0
    %858 = vmatpush1.msra.mxu0 0.0
    %859 = vmatprep.subr.mxu0 0.0
    %860 = vmatpush1.msra.mxu0 0.0
    %861 = vmatprep.subr.mxu0 0.0
    %862 = vmatpush1.msra.mxu0 0.0
    %863 = vmatprep.subr.mxu0 0.0
    %864 = vmatpush1.msra.mxu0 0.0
    %865 = vmatprep.subr.mxu0 0.0
    %866 = vmatpush1.msra.mxu0 0.0
    %867 = vmatprep.subr.mxu0 0.0
    %868 = vmatpush1.msra.mxu0 0.0
    %869 = vmatprep.subr.mxu0 0.0
    %v870 = vand.u32 %v73, 4294901760
    %871 = vmatpush1.msra.mxu0 %v870
    %872 = vmatprep.subr.mxu0 0.0
    %v873 = vand.u32 %v72, 4294901760
    %874 = vmatpush1.msra.mxu0 %v873
    %875 = vmatprep.subr.mxu0 0.0
    %v876 = vand.u32 %v71, 4294901760
    %877 = vmatpush1.msra.mxu0 %v876
    %878 = vmatprep.subr.mxu0 0.0
    %v879 = vand.u32 %v70, 4294901760
    %880 = vmatpush1.msra.mxu0 %v879
    %881 = vmatprep.subr.mxu0 0.0
    %v882 = vand.u32 %v69, 4294901760
    %883 = vmatpush1.msra.mxu0 %v882
    %884 = vmatprep.subr.mxu0 0.0
    %v885 = vand.u32 %v68, 4294901760
    %886 = vmatpush1.msra.mxu0 %v885
    %887 = vmatprep.subr.mxu0 0.0
    %v888 = vand.u32 %v67, 4294901760
    %889 = vmatpush1.msra.mxu0 %v888
    %890 = vmatprep.subr.mxu0 0.0
    %v891 = vand.u32 %v66, 4294901760
    %892 = vmatpush1.msra.mxu0 %v891
    %893 = vmatprep.subr.mxu0 0.0
    %894 = vmatpush2.msra.mxu0 0.0
    %895 = vmatprep.subr.mxu0 0.0
    %896 = vmatpush2.msra.mxu0 0.0
    %897 = vmatprep.subr.mxu0 0.0
    %898 = vmatpush2.msra.mxu0 0.0
    %899 = vmatprep.subr.mxu0 0.0
    %900 = vmatpush2.msra.mxu0 0.0
    %901 = vmatprep.subr.mxu0 0.0
    %902 = vmatpush2.msra.mxu0 0.0
    %903 = vmatprep.subr.mxu0 0.0
    %904 = vmatpush2.msra.mxu0 0.0
    %905 = vmatprep.subr.mxu0 0.0
    %906 = vmatpush2.msra.mxu0 0.0
    %907 = vmatprep.subr.mxu0 0.0
    %908 = vmatpush2.msra.mxu0 0.0
    %909 = vmatprep.subr.mxu0 0.0
    %910 = vmatpush2.msra.mxu0 0.0
    %911 = vmatprep.subr.mxu0 0.0
    %912 = vmatpush2.msra.mxu0 0.0
    %913 = vmatprep.subr.mxu0 0.0
    %914 = vmatpush2.msra.mxu0 0.0
    %915 = vmatprep.subr.mxu0 0.0
    %916 = vmatpush2.msra.mxu0 0.0
    %917 = vmatprep.subr.mxu0 0.0
    %918 = vmatpush2.msra.mxu0 0.0
    %919 = vmatprep.subr.mxu0 0.0
    %920 = vmatpush2.msra.mxu0 0.0
    %921 = vmatprep.subr.mxu0 0.0
    %922 = vmatpush2.msra.mxu0 0.0
    %923 = vmatprep.subr.mxu0 0.0
    %924 = vmatpush2.msra.mxu0 0.0
    %925 = vmatprep.mubr.f32.mxu0 0.0
    %v926 = vand.u32 %v569, 4294901760
    %v927 = vsub.f32 %v569, %v926
    %v928 = vand.u32 %v927, 4294901760
    %929 = vmatmul.mubr.f32.gmra.mxu0 %v928
    %v930 = vpop.f32.mrf.mxu0
    %v931 = vadd.f32 %v850, %v930
    %v932 = vpop.f32.mrf.mxu0
    %933 = vdwg.mxu0
    %934 = vmatprep.subr.mxu0 0.0
    %935 = vmatpush1.msra.mxu0 0.0
    %936 = vmatprep.subr.mxu0 0.0
    %937 = vmatpush1.msra.mxu0 0.0
    %938 = vmatprep.subr.mxu0 0.0
    %939 = vmatpush1.msra.mxu0 0.0
    %940 = vmatprep.subr.mxu0 0.0
    %941 = vmatpush1.msra.mxu0 0.0
    %942 = vmatprep.subr.mxu0 0.0
    %943 = vmatpush1.msra.mxu0 0.0
    %944 = vmatprep.subr.mxu0 0.0
    %945 = vmatpush1.msra.mxu0 0.0
    %946 = vmatprep.subr.mxu0 0.0
    %947 = vmatpush1.msra.mxu0 0.0
    %948 = vmatprep.subr.mxu0 0.0
    %949 = vmatpush1.msra.mxu0 0.0
    %950 = vmatprep.subr.mxu0 0.0
    %v951 = vand.u32 %v73, 4294901760
    %v952 = vsub.f32 %v73, %v951
    %v953 = vand.u32 %v952, 4294901760
    %954 = vmatpush1.msra.mxu0 %v953
    %955 = vmatprep.subr.mxu0 0.0
    %v956 = vand.u32 %v72, 4294901760
    %v957 = vsub.f32 %v72, %v956
    %v958 = vand.u32 %v957, 4294901760
    %959 = vmatpush1.msra.mxu0 %v958
    %960 = vmatprep.subr.mxu0 0.0
    %v961 = vand.u32 %v71, 4294901760
    %v962 = vsub.f32 %v71, %v961
    %v963 = vand.u32 %v962, 4294901760
    %964 = vmatpush1.msra.mxu0 %v963
    %965 = vmatprep.subr.mxu0 0.0
    %v966 = vand.u32 %v70, 4294901760
    %v967 = vsub.f32 %v70, %v966
    %v968 = vand.u32 %v967, 4294901760
    %969 = vmatpush1.msra.mxu0 %v968
    %970 = vmatprep.subr.mxu0 0.0
    %v971 = vand.u32 %v69, 4294901760
    %v972 = vsub.f32 %v69, %v971
    %v973 = vand.u32 %v972, 4294901760
    %974 = vmatpush1.msra.mxu0 %v973
    %975 = vmatprep.subr.mxu0 0.0
    %v976 = vand.u32 %v68, 4294901760
    %v977 = vsub.f32 %v68, %v976
    %v978 = vand.u32 %v977, 4294901760
    %979 = vmatpush1.msra.mxu0 %v978
    %980 = vmatprep.subr.mxu0 0.0
    %v981 = vand.u32 %v67, 4294901760
    %v982 = vsub.f32 %v67, %v981
    %v983 = vand.u32 %v982, 4294901760
    %984 = vmatpush1.msra.mxu0 %v983
    %985 = vmatprep.subr.mxu0 0.0
    %v986 = vand.u32 %v66, 4294901760
    %v987 = vsub.f32 %v66, %v986
    %v988 = vand.u32 %v987, 4294901760
    %989 = vmatpush1.msra.mxu0 %v988
    %990 = vmatprep.subr.mxu0 0.0
    %991 = vmatpush2.msra.mxu0 0.0
    %992 = vmatprep.subr.mxu0 0.0
    %993 = vmatpush2.msra.mxu0 0.0
    %994 = vmatprep.subr.mxu0 0.0
    %995 = vmatpush2.msra.mxu0 0.0
    %996 = vmatprep.subr.mxu0 0.0
    %997 = vmatpush2.msra.mxu0 0.0
    %998 = vmatprep.subr.mxu0 0.0
    %999 = vmatpush2.msra.mxu0 0.0
    %1000 = vmatprep.subr.mxu0 0.0
    %1001 = vmatpush2.msra.mxu0 0.0
    %1002 = vmatprep.subr.mxu0 0.0
    %1003 = vmatpush2.msra.mxu0 0.0
    %1004 = vmatprep.subr.mxu0 0.0
    %1005 = vmatpush2.msra.mxu0 0.0
    %1006 = vmatprep.subr.mxu0 0.0
    %1007 = vmatpush2.msra.mxu0 0.0
    %1008 = vmatprep.subr.mxu0 0.0
    %1009 = vmatpush2.msra.mxu0 0.0
    %1010 = vmatprep.subr.mxu0 0.0
    %1011 = vmatpush2.msra.mxu0 0.0
    %1012 = vmatprep.subr.mxu0 0.0
    %1013 = vmatpush2.msra.mxu0 0.0
    %1014 = vmatprep.subr.mxu0 0.0
    %1015 = vmatpush2.msra.mxu0 0.0
    %1016 = vmatprep.subr.mxu0 0.0
    %1017 = vmatpush2.msra.mxu0 0.0
    %1018 = vmatprep.subr.mxu0 0.0
    %1019 = vmatpush2.msra.mxu0 0.0
    %1020 = vmatprep.subr.mxu0 0.0
    %1021 = vmatpush2.msra.mxu0 0.0
    %1022 = vmatprep.mubr.f32.mxu0 0.0
    %v1023 = vand.u32 %v569, 4294901760
    %1024 = vmatmul.mubr.f32.gmra.mxu0 %v1023
    %v1025 = vpop.f32.mrf.mxu0
    %v1026 = vadd.f32 %v931, %v1025
    %v1027 = vpop.f32.mrf.mxu0
    %1028 = vdwg.mxu0
    %1029 = vmatprep.subr.mxu0 0.0
    %1030 = vmatpush1.msra.mxu0 0.0
    %1031 = vmatprep.subr.mxu0 0.0
    %1032 = vmatpush1.msra.mxu0 0.0
    %1033 = vmatprep.subr.mxu0 0.0
    %1034 = vmatpush1.msra.mxu0 0.0
    %1035 = vmatprep.subr.mxu0 0.0
    %1036 = vmatpush1.msra.mxu0 0.0
    %1037 = vmatprep.subr.mxu0 0.0
    %1038 = vmatpush1.msra.mxu0 0.0
    %1039 = vmatprep.subr.mxu0 0.0
    %1040 = vmatpush1.msra.mxu0 0.0
    %1041 = vmatprep.subr.mxu0 0.0
    %1042 = vmatpush1.msra.mxu0 0.0
    %1043 = vmatprep.subr.mxu0 0.0
    %1044 = vmatpush1.msra.mxu0 0.0
    %1045 = vmatprep.subr.mxu0 0.0
    %v1046 = vand.u32 %v73, 4294901760
    %1047 = vmatpush1.msra.mxu0 %v1046
    %1048 = vmatprep.subr.mxu0 0.0
    %v1049 = vand.u32 %v72, 4294901760
    %1050 = vmatpush1.msra.mxu0 %v1049
    %1051 = vmatprep.subr.mxu0 0.0
    %v1052 = vand.u32 %v71, 4294901760
    %1053 = vmatpush1.msra.mxu0 %v1052
    %1054 = vmatprep.subr.mxu0 0.0
    %v1055 = vand.u32 %v70, 4294901760
    %1056 = vmatpush1.msra.mxu0 %v1055
    %1057 = vmatprep.subr.mxu0 0.0
    %v1058 = vand.u32 %v69, 4294901760
    %1059 = vmatpush1.msra.mxu0 %v1058
    %1060 = vmatprep.subr.mxu0 0.0
    %v1061 = vand.u32 %v68, 4294901760
    %1062 = vmatpush1.msra.mxu0 %v1061
    %1063 = vmatprep.subr.mxu0 0.0
    %v1064 = vand.u32 %v67, 4294901760
    %1065 = vmatpush1.msra.mxu0 %v1064
    %1066 = vmatprep.subr.mxu0 0.0
    %v1067 = vand.u32 %v66, 4294901760
    %1068 = vmatpush1.msra.mxu0 %v1067
    %1069 = vmatprep.subr.mxu0 0.0
    %1070 = vmatpush2.msra.mxu0 0.0
    %1071 = vmatprep.subr.mxu0 0.0
    %1072 = vmatpush2.msra.mxu0 0.0
    %1073 = vmatprep.subr.mxu0 0.0
    %1074 = vmatpush2.msra.mxu0 0.0
    %1075 = vmatprep.subr.mxu0 0.0
    %1076 = vmatpush2.msra.mxu0 0.0
    %1077 = vmatprep.subr.mxu0 0.0
    %1078 = vmatpush2.msra.mxu0 0.0
    %1079 = vmatprep.subr.mxu0 0.0
    %1080 = vmatpush2.msra.mxu0 0.0
    %1081 = vmatprep.subr.mxu0 0.0
    %1082 = vmatpush2.msra.mxu0 0.0
    %1083 = vmatprep.subr.mxu0 0.0
    %1084 = vmatpush2.msra.mxu0 0.0
    %1085 = vmatprep.subr.mxu0 0.0
    %1086 = vmatpush2.msra.mxu0 0.0
    %1087 = vmatprep.subr.mxu0 0.0
    %1088 = vmatpush2.msra.mxu0 0.0
    %1089 = vmatprep.subr.mxu0 0.0
    %1090 = vmatpush2.msra.mxu0 0.0
    %1091 = vmatprep.subr.mxu0 0.0
    %1092 = vmatpush2.msra.mxu0 0.0
    %1093 = vmatprep.subr.mxu0 0.0
    %1094 = vmatpush2.msra.mxu0 0.0
    %1095 = vmatprep.subr.mxu0 0.0
    %1096 = vmatpush2.msra.mxu0 0.0
    %1097 = vmatprep.subr.mxu0 0.0
    %1098 = vmatpush2.msra.mxu0 0.0
    %1099 = vmatprep.subr.mxu0 0.0
    %1100 = vmatpush2.msra.mxu0 0.0
    %1101 = vmatprep.mubr.f32.mxu0 0.0
    %v1102 = vand.u32 %v569, 4294901760
    %1103 = vmatmul.mubr.f32.gmra.mxu0 %v1102
    %v1104 = vpop.f32.mrf.mxu0
    %v1105 = vadd.f32 %v1026, %v1104
    %v1106 = vpop.f32.mrf.mxu0
    %1107 = vdwg.mxu0
    %v1108 = vld [vmem:[%s5] sm:$0x1]
    %v1110 = vlaneseq
    %v1111 = vshrl.u32 %v1110, 7
    %v1112 = vsub.s32 0, %v1111
    %v1113 = vrot.slane %v1108, %v1112
    %v1115 = vadd.f32 %v1105, %v1113
    %v1116 = vxor.u32 %v1115, 2147483648
    %v1117 = vmul.f32 %v1116, 1.442695
    %v1118 = vpow.pop %v1117
    %v1119 = vadd.f32 %v1118, 1.0
    %v1120 = vrcp.pop %v1119
    %v1121 = vmul.f32 1.0, %v1120
    %v1122 = vld [vmem:[%s6] sm:$0x1]
    %v1124 = vlaneseq
    %v1125 = vshrl.u32 %v1124, 7
    %v1126 = vsub.s32 0, %v1125
    %v1127 = vrot.slane %v1122, %v1126
    %v1129 = vmul.f32 %v1121, %v1127
    %vm1130 = vcmask 1041408
    %v1131 = vsel %vm1130, %v1129, 0.0
    %1132 = vadd.xlane.f32.xlu0 %v1131
    %v1133 = vpop.xlane.xlu0 %1132
    %s1134 = sld [smem:[#allocation3]]
    %v1135 = vstv %s1134
    %v1136 = vadd.f32 %v1133, %v1135
    %vm1137 = vcmask 1024
    %1138 = vst.msk [vmem:[%s7] sm:$0x3] %vm1137, %v1136
    // Predicated region
    $region38: #{tpu_custom_call.1} parent=1 // pred_check
      _
    $region39: #{tpu_custom_call.1} parent=1 // pred_check_branch
      %1140 = sbr.rel (0) target = $region41
    $region40: #{tpu_custom_call.1} parent=1 // pred_region
      _
    $region41: #{tpu_custom_call.1} parent=1 // pred_fallthru
      _
    // Predicated region
    $region42: #{tpu_custom_call.1} parent=1 // pred_check
      _
    $region43: #{tpu_custom_call.1} parent=1 // pred_check_branch
      %1142 = sbr.rel (0) target = $region45
    $region44: #{tpu_custom_call.1} parent=1 // pred_region
      _
    $region45: #{tpu_custom_call.1} parent=1 // pred_fallthru
      _
    %1143 = vsyncpa [#allocation5], 1
    %1144 = vsyncpa [#allocation7], 1

</llo_original>
